<compile_context>
chip_gen: v7x
topology: tpu7x:2x2x1
jax: 0.10.0
libtpu: 0.0.40
codegen_flags: <defaults>
</compile_context>

<pallas_src>
import functools

import jax
import jax.numpy as jnp
from jax.experimental import pallas as pl
from jax.experimental.pallas import tpu as pltpu


def _decoder_kernel(x_ref, w1_ref, b1_ref, w2_ref, b2_ref, o_ref, acc_ref, *, inv_hw):
    # x_ref: (TN, THW, C) input tile (channels-last)
    # w1_ref: (C, 9), b1_ref: (1, 9), w2_ref: (9, n_classes), b2_ref: (1, n_classes)
    # o_ref: (TN, n_classes), acc_ref: (TN, C) f32 scratch (resident across k)
    k = pl.program_id(1)

    @pl.when(k == 0)
    def _():
        acc_ref[...] = jnp.zeros_like(acc_ref)

    # Per-step work is just load + reduce-add; hidden under the x DMA.
    x = x_ref[...].astype(jnp.float32)              # (TN, THW, C)
    acc_ref[...] += jnp.sum(x, axis=1)              # (TN, C)

    @pl.when(k == pl.num_programs(1) - 1)
    def _():
        # AdaptiveAvgPool2d((1,1)) + flatten  ==  mean over HW.
        pooled = acc_ref[...] * inv_hw                                  # (TN, C)
        # decoder[0]: Linear(in_features, 9) ; decoder[1]: ReLU
        h = jnp.dot(pooled, w1_ref[...],
                    preferred_element_type=jnp.float32) + b1_ref[...]   # (TN, 9)
        h = jnp.maximum(h, 0.0)
        # decoder[2]: Linear(9, n_classes)
        out = jnp.dot(h, w2_ref[...],
                      preferred_element_type=jnp.float32) + b2_ref[...]  # (TN, n_classes)
        o_ref[...] = out.astype(o_ref.dtype)


def _pick_tile(dim, target, align):
    """Largest divisor of `dim` that is <= target and a multiple of `align`;
    falls back to the full dim (always legal for BlockSpec)."""
    if dim <= target:
        return dim
    for t in range(min(dim, target), 0, -1):
        if dim % t == 0 and t % align == 0:
            return t
    return dim


def resnet_decoder_forward_nhwc(x_nhwc, w1, b1, w2, b2, *,
                                tile_n=None, tile_hw=None,
                                vmem_limit_bytes=48 * 1024 * 1024):
    """x_nhwc: (N, H, W, C) channels-last feature map (any float dtype);
    weights in (in, out) layout; biases as (1, out). Returns (N, n_classes) f32."""
    N, H, W, C = x_nhwc.shape
    HW = H * W
    n_classes = w2.shape[1]
    x = x_nhwc.reshape(N, HW, C)

    if tile_n is None:
        tile_n = _pick_tile(N, 8, 8)           # multiple of 8 or full N (out BlockSpec rule)
    if tile_hw is None:
        # Target ~8 MiB per (double-buffered) x tile; THW multiple of 8 or full HW.
        budget_elems = max(8, (8 * 1024 * 1024) // (tile_n * C * x.dtype.itemsize))
        tile_hw = _pick_tile(HW, budget_elems, 8)

    grid = (N // tile_n, HW // tile_hw)
    inv_hw = 1.0 / float(HW)
    kernel = functools.partial(_decoder_kernel, inv_hw=inv_hw)

    bytes_accessed = (x.size * x.dtype.itemsize
                      + sum(a.size * a.dtype.itemsize for a in (w1, b1, w2, b2))
                      + N * n_classes * 4)
    cost = pl.CostEstimate(
        flops=2 * N * HW * C + 2 * N * C * 9 + 2 * N * 9 * n_classes,
        transcendentals=0,
        bytes_accessed=bytes_accessed)

    return pl.pallas_call(
        kernel,
        out_shape=jax.ShapeDtypeStruct((N, n_classes), jnp.float32),
        grid_spec=pltpu.PrefetchScalarGridSpec(
            num_scalar_prefetch=0,
            grid=grid,
            in_specs=[
                pl.BlockSpec((tile_n, tile_hw, C), lambda i, k: (i, k, 0)),   # x tile
                pl.BlockSpec((C, 9), lambda i, k: (0, 0)),                    # w1
                pl.BlockSpec((1, 9), lambda i, k: (0, 0)),                    # b1
                pl.BlockSpec((9, n_classes), lambda i, k: (0, 0)),            # w2
                pl.BlockSpec((1, n_classes), lambda i, k: (0, 0)),            # b2
            ],
            out_specs=pl.BlockSpec((tile_n, n_classes), lambda i, k: (i, 0)),
            scratch_shapes=[pltpu.VMEM((tile_n, C), jnp.float32)],
        ),
        compiler_params=pltpu.CompilerParams(
            dimension_semantics=("parallel", "arbitrary"),
            vmem_limit_bytes=vmem_limit_bytes),
        cost_estimate=cost,
    )(x, w1, b1, w2, b2)


def resnet_decoder_forward(x_nchw, w1, b1, w2, b2, **kw):
    """Convenience NCHW entry point matching the PyTorch layout."""
    # TODO(synk): ideally the upstream ResNet encoder emits NHWC directly so this
    # transpose (a separate XLA op) is not paid before the kernel.
    x_nhwc = jnp.transpose(x_nchw, (0, 2, 3, 1))
    return resnet_decoder_forward_nhwc(x_nhwc, w1, b1, w2, b2, **kw)


def init_params(key, in_features, n_classes):
    """Deterministic params mirroring nn.Linear default init (uniform in ±1/sqrt(fan_in))."""
    k1, k2, k3, k4 = jax.random.split(key, 4)
    bound1 = 1.0 / jnp.sqrt(in_features)
    bound2 = 1.0 / jnp.sqrt(9.0)
    # Stored as (in, out) so the kernel does pooled @ W (PyTorch stores (out, in)).
    w1 = jax.random.uniform(k1, (in_features, 9), jnp.float32, -bound1, bound1)
    b1 = jax.random.uniform(k2, (1, 9), jnp.float32, -bound1, bound1)
    w2 = jax.random.uniform(k3, (9, n_classes), jnp.float32, -bound2, bound2)
    b2 = jax.random.uniform(k4, (1, n_classes), jnp.float32, -bound2, bound2)
    return w1, b1, w2, b2


def reference_forward(x_nchw, w1, b1, w2, b2):
    pooled = jnp.mean(x_nchw.astype(jnp.float32), axis=(2, 3))   # (N, C)
    h = jnp.maximum(pooled @ w1 + b1, 0.0)                       # (N, 9)
    return h @ w2 + b2                                           # (N, n_classes)


if __name__ == "__main__":
    key = jax.random.PRNGKey(0)
    kx, kp = jax.random.split(key)

    N, C, H, W = 2, 4, 16, 16          # in_features = C = 4
    n_classes = 3

    x = jax.random.normal(kx, (N, C, H, W), dtype=jnp.float32)
    w1, b1, w2, b2 = init_params(kp, C, n_classes)

    # tile_hw=64 -> grid over HW has 4 steps, exercising the accumulator /
    # init / finalize path; default auto-tiling also works (single HW step here).
    out = resnet_decoder_forward(x, w1, b1, w2, b2, tile_hw=64)
    out = jax.block_until_ready(out)

    ref = reference_forward(x, w1, b1, w2, b2)
    assert out.shape == (N, n_classes)
    assert jnp.allclose(out, ref, atol=1e-5, rtol=1e-5), "mismatch vs reference"

    print("KERNEL_OK")
</pallas_src>

<mosaic_0001>
module attributes {stable_mosaic.version = 11 : i64} {
  func.func @_decoder_kernel(%arg0: i32, %arg1: i32, %arg2: memref<2x64x4xf32, #tpu.memory_space<vmem>>, %arg3: memref<4x9xf32, #tpu.memory_space<vmem>>, %arg4: memref<1x9xf32, #tpu.memory_space<vmem>>, %arg5: memref<9x3xf32, #tpu.memory_space<vmem>>, %arg6: memref<1x3xf32, #tpu.memory_space<vmem>>, %arg7: memref<2x3xf32, #tpu.memory_space<vmem>>, %arg8: memref<2x4xf32, #tpu.memory_space<vmem>>) attributes {dimension_semantics = [#tpu.dimension_semantics<parallel>, #tpu.dimension_semantics<arbitrary>], iteration_bounds = array<i64: 1, 4>, scalar_prefetch = 0 : i64, scratch_operands = 1 : i64, tpu.core_type = #tpu.core_type<tc>, window_params = [{transform_indices = @transform_0, window_bounds = array<i64: 2, 64, 4>}, {pipeline_mode = #tpu.pipeline_mode<synchronous>, transform_indices = @transform_1, window_bounds = array<i64: 4, 9>}, {pipeline_mode = #tpu.pipeline_mode<synchronous>, transform_indices = @transform_2, window_bounds = array<i64: 1, 9>}, {pipeline_mode = #tpu.pipeline_mode<synchronous>, transform_indices = @transform_3, window_bounds = array<i64: 9, 3>}, {pipeline_mode = #tpu.pipeline_mode<synchronous>, transform_indices = @transform_4, window_bounds = array<i64: 1, 3>}, {transform_indices = @transform_5, window_bounds = array<i64: 2, 3>}]} {
    %c0_i32 = arith.constant 0 : i32
    %0 = arith.cmpi eq, %arg1, %c0_i32 : i32
    %1 = arith.extui %0 : i1 to i32
    %c0_i32_0 = arith.constant 0 : i32
    %2 = arith.cmpi ne, %1, %c0_i32_0 : i32
    scf.if %2 {
      %cst_8 = arith.constant 0.000000e+00 : f32
      %11 = vector.broadcast %cst_8 : f32 to vector<2x4xf32>
      %c0_9 = arith.constant 0 : index
      %c0_10 = arith.constant 0 : index
      %12 = vector.load %arg8[%c0_9, %c0_10] : memref<2x4xf32, #tpu.memory_space<vmem>>, vector<2x4xf32>
      tpu.vector_store %arg8[%c0_9, %c0_10], %11 {strides = array<i32>} : memref<2x4xf32, #tpu.memory_space<vmem>>, vector<2x4xf32>,
    } else {
    }
    %c0 = arith.constant 0 : index
    %c0_1 = arith.constant 0 : index
    %c0_2 = arith.constant 0 : index
    %3 = vector.load %arg2[%c0, %c0_1, %c0_2] : memref<2x64x4xf32, #tpu.memory_space<vmem>>, vector<2x64x4xf32>
    %c0_3 = arith.constant 0 : index
    %c0_4 = arith.constant 0 : index
    %4 = vector.load %arg8[%c0_3, %c0_4] : memref<2x4xf32, #tpu.memory_space<vmem>>, vector<2x4xf32>
    %cst = arith.constant dense<0.000000e+00> : vector<2x4xf32>
    %5 = vector.multi_reduction <add>, %3, %cst [1] : vector<2x64x4xf32> to vector<2x4xf32>
    %6 = arith.addf %4, %5 : vector<2x4xf32>
    %c0_5 = arith.constant 0 : index
    %c0_6 = arith.constant 0 : index
    %7 = vector.load %arg8[%c0_5, %c0_6] : memref<2x4xf32, #tpu.memory_space<vmem>>, vector<2x4xf32>
    tpu.vector_store %arg8[%c0_5, %c0_6], %6 {strides = array<i32>} : memref<2x4xf32, #tpu.memory_space<vmem>>, vector<2x4xf32>,
    %c3_i32 = arith.constant 3 : i32
    %8 = arith.cmpi eq, %arg1, %c3_i32 : i32
    %9 = arith.extui %8 : i1 to i32
    %c0_i32_7 = arith.constant 0 : i32
    %10 = arith.cmpi ne, %9, %c0_i32_7 : i32
    scf.if %10 {
      %c0_8 = arith.constant 0 : index
      %c0_9 = arith.constant 0 : index
      %11 = vector.load %arg8[%c0_8, %c0_9] : memref<2x4xf32, #tpu.memory_space<vmem>>, vector<2x4xf32>
      %cst_10 = arith.constant 3.906250e-03 : f32
      %12 = vector.broadcast %cst_10 : f32 to vector<2x4xf32>
      %13 = arith.mulf %11, %12 : vector<2x4xf32>
      %c0_11 = arith.constant 0 : index
      %c0_12 = arith.constant 0 : index
      %14 = vector.load %arg3[%c0_11, %c0_12] : memref<4x9xf32, #tpu.memory_space<vmem>>, vector<4x9xf32>
      %cst_13 = arith.constant dense<0.000000e+00> : vector<2x9xf32>
      %15 = tpu.matmul %13, %14, %cst_13 {dimension_numbers = #tpu.dot_dimension_numbers<[1], [0], [0], [1], [0, 0, 1, 1], [], []>} : vector<2x4xf32>, vector<4x9xf32>, vector<2x9xf32> -> vector<2x9xf32>
      %c0_14 = arith.constant 0 : index
      %c0_15 = arith.constant 0 : index
      %16 = vector.load %arg4[%c0_14, %c0_15] : memref<1x9xf32, #tpu.memory_space<vmem>>, vector<1x9xf32>
      %17 = vector.broadcast %16 : vector<1x9xf32> to vector<2x9xf32>
      %18 = arith.addf %15, %17 : vector<2x9xf32>
      %cst_16 = arith.constant 0.000000e+00 : f32
      %19 = vector.broadcast %cst_16 : f32 to vector<2x9xf32>
      %20 = arith.maximumf %18, %19 : vector<2x9xf32>
      %c0_17 = arith.constant 0 : index
      %c0_18 = arith.constant 0 : index
      %21 = vector.load %arg5[%c0_17, %c0_18] : memref<9x3xf32, #tpu.memory_space<vmem>>, vector<9x3xf32>
      %cst_19 = arith.constant dense<0.000000e+00> : vector<2x3xf32>
      %22 = tpu.matmul %20, %21, %cst_19 {dimension_numbers = #tpu.dot_dimension_numbers<[1], [0], [0], [1], [0, 0, 1, 1], [], []>} : vector<2x9xf32>, vector<9x3xf32>, vector<2x3xf32> -> vector<2x3xf32>
      %c0_20 = arith.constant 0 : index
      %c0_21 = arith.constant 0 : index
      %23 = vector.load %arg6[%c0_20, %c0_21] : memref<1x3xf32, #tpu.memory_space<vmem>>, vector<1x3xf32>
      %24 = vector.broadcast %23 : vector<1x3xf32> to vector<2x3xf32>
      %25 = arith.addf %22, %24 : vector<2x3xf32>
      %c0_22 = arith.constant 0 : index
      %c0_23 = arith.constant 0 : index
      %26 = vector.load %arg7[%c0_22, %c0_23] : memref<2x3xf32, #tpu.memory_space<vmem>>, vector<2x3xf32>
      tpu.vector_store %arg7[%c0_22, %c0_23], %25 {strides = array<i32>} : memref<2x3xf32, #tpu.memory_space<vmem>>, vector<2x3xf32>,
    } else {
    }
    return
  }
  func.func @transform_0(%arg0: i32, %arg1: i32) -> (i32, i32, i32) {
    %c0_i32 = arith.constant 0 : i32
    %c0_i32_0 = arith.constant 0 : i32
    return %arg0, %arg1, %c0_i32 : i32, i32, i32
  }
  func.func @transform_1(%arg0: i32, %arg1: i32) -> (i32, i32) {
    %c0_i32 = arith.constant 0 : i32
    %c0_i32_0 = arith.constant 0 : i32
    %c0_i32_1 = arith.constant 0 : i32
    return %c0_i32, %c0_i32_0 : i32, i32
  }
  func.func @transform_2(%arg0: i32, %arg1: i32) -> (i32, i32) {
    %c0_i32 = arith.constant 0 : i32
    %c0_i32_0 = arith.constant 0 : i32
    %c0_i32_1 = arith.constant 0 : i32
    return %c0_i32, %c0_i32_0 : i32, i32
  }
  func.func @transform_3(%arg0: i32, %arg1: i32) -> (i32, i32) {
    %c0_i32 = arith.constant 0 : i32
    %c0_i32_0 = arith.constant 0 : i32
    %c0_i32_1 = arith.constant 0 : i32
    return %c0_i32, %c0_i32_0 : i32, i32
  }
  func.func @transform_4(%arg0: i32, %arg1: i32) -> (i32, i32) {
    %c0_i32 = arith.constant 0 : i32
    %c0_i32_0 = arith.constant 0 : i32
    %c0_i32_1 = arith.constant 0 : i32
    return %c0_i32, %c0_i32_0 : i32, i32
  }
  func.func @transform_5(%arg0: i32, %arg1: i32) -> (i32, i32) {
    %c0_i32 = arith.constant 0 : i32
    %c0_i32_0 = arith.constant 0 : i32
    return %arg0, %c0_i32 : i32, i32
  }
}

</mosaic_0001>

<llo_original>
// kernel: tpu_custom_call.1
$region0: #{tpu_custom_call.1}
  #allocation0 [shape = 'u32[]', space=smem, size = 0x4, offset = 0x4, fixed_abs, tag = 'smem constant byte address 0x4 - core index']
  #allocation1 [shape = 'u32[144,128]{1,0:T(1,128)}', space=vmem, size = 0x12000, scoped, tag = 'internal scratch']
  #allocation2 [shape = 'f32[2,4]{1,0:T(2,128)}', space=vmem, size = 0x400, scoped, tag = 'scratch operand']
  %s0 = inlined_call_operand.vmem [shape: f32[2,256,4], index: 0, kind: input, shape index: {}]
  %s1 = inlined_call_operand.vmem [shape: f32[4,9], index: 1, kind: input, shape index: {}]
  %s2 = inlined_call_operand.vmem [shape: f32[1,9], index: 2, kind: input, shape index: {}]
  %s3 = inlined_call_operand.vmem [shape: f32[9,3], index: 3, kind: input, shape index: {}]
  %s4 = inlined_call_operand.vmem [shape: f32[1,3], index: 4, kind: input, shape index: {}]
  %s5 = inlined_call_operand.hbm [shape: f32[2,3], index: 5, kind: output, shape index: {}]
  %s6 = sld [smem:[#allocation0]]
  $region99: #{tpu_custom_call.1} parent=0
    _
  %s8 = ssub.s32 1, %s6
  %s9 = scalar_select 0, %s8, %s6
  $region1: #{tpu_custom_call.1} parent=0
    #allocation3 [shape = 'u8[131072]{0}', space=vmem, size = 0x20000, scoped, tag = 'input window, operand 0']
    #allocation4 [shape = 'u8[1024]{0}', space=vmem, size = 0x400, scoped, tag = 'output window, operand 0, single buffered']
    #allocation5 [shape = 's32[2]{0}', space=sflag, size = 0x8, scoped, tag = 'scoped memory for tpu_custom_call.1']
    %10 = vsyncpa [#allocation5], 0
    loop: start=0, step=1, limit=6
    $region2: #{tpu_custom_call.1} parent=1 // loop_pre_header
      _
    $region3: #{tpu_custom_call.1} parent=1 // loop_header
      %s12 = sphi 0, %s16
      %p13 = scmp.ge.s32.totalorder %s12, 6
      %s19 = sphi 0, %s31
      %s20 = sphi 0, %s27
      %s21 = sphi 0, %s19
      %s22 = sphi 0, %s20
      %s23 = sphi 0, %s21
      %s24 = sphi 0, %s22
      %s36 = sphi 0, %s38
      %s39 = sphi 0, %s36
      %s40 = sphi 0, %s39
      %s56 = sphi 0, %s40
      %s60 = sphi 0, %s60
      %s62 = sphi 0, %s60
      %s63 = sphi 0, %s62
      %s77 = sphi 0, %s63
      %s81 = sphi 0, %s81
      %s83 = sphi 0, %s81
      %s84 = sphi 0, %s83
      %s98 = sphi 0, %s84
      %s102 = sphi 0, %s102
      %s104 = sphi 0, %s102
      %s105 = sphi 0, %s104
      %s119 = sphi 0, %s105
      %s123 = sphi 0, %s123
      %s125 = sphi 0, %s123
      %s126 = sphi 0, %s125
      %s140 = sphi 0, %s126
      %s146 = sphi 0, %s148
      %s149 = sphi 0, %s146
      %s150 = sphi 0, %s149
      %s166 = sphi 0, %s150
    $region4: #{tpu_custom_call.1} parent=1 // loop_header_branch
      %15 = sbr.rel (%p13) target = $region8
    $region5: #{tpu_custom_call.1} parent=1 // loop_body
      %s17 = ssub.s32 %s12, 1
      %s18 = ssub.s32 %s12, 2
      %s25 = sadd.s32 1, %s20
      %p26 = scmp.ge.s32.totalorder %s25, 4
      %s27 = scalar_select %p26, 0, %s25
      %s28 = sadd.s32 1, %s19
      %s29 = scalar_select %p26, %s28, %s19
      %p30 = scmp.ge.s32.totalorder %s29, 1
      %s31 = scalar_select %p30, 0, %s29
      %s32 = ssub.s32 %s19, %s31
      %s33 = ssub.s32 %s20, %s27
      %s34 = sor.u32 %s32, %s33
      %p35 = scmp.eq.s32.totalorder %s34, 0
      %s37 = sadd.s32 %s36, 1
      %s38 = scalar_select %p35, %s36, %s37
      %p41 = pneg %p35
      %p42 = scmp.eq.s32.totalorder %s12, 3
      %p43 = por %p41, %p42
      %p44 = scmp.ne.s32.totalorder %s36, %s39
      %p45 = scmp.eq.s32.totalorder %s12, 0
      %p46 = por %p44, %p45
      %p47 = scmp.ne.s32.totalorder %s36, %s39
      %p48 = scmp.eq.s32.totalorder %s17, 3
      %p49 = por %p47, %p48
      %p50 = scmp.ne.s32.totalorder %s39, %s40
      %p51 = scmp.eq.s32.totalorder %s17, 0
      %p52 = por %p50, %p51
      %p53 = scmp.ne.s32.totalorder %s39, %s40
      %p54 = scmp.eq.s32.totalorder %s18, 3
      %p55 = por %p53, %p54
      %p57 = scmp.ne.s32.totalorder %s40, %s56
      %p58 = scmp.eq.s32.totalorder %s18, 0
      %p59 = por %p57, %p58
      %s61 = sadd.s32 %s60, 1
      %p64 = scmp.eq.s32.totalorder %s12, 3
      %p65 = scmp.ne.s32.totalorder %s60, %s62
      %p66 = scmp.eq.s32.totalorder %s12, 0
      %p67 = por %p65, %p66
      %p68 = scmp.ne.s32.totalorder %s60, %s62
      %p69 = scmp.eq.s32.totalorder %s17, 3
      %p70 = por %p68, %p69
      %p71 = scmp.ne.s32.totalorder %s62, %s63
      %p72 = scmp.eq.s32.totalorder %s17, 0
      %p73 = por %p71, %p72
      %p74 = scmp.ne.s32.totalorder %s62, %s63
      %p75 = scmp.eq.s32.totalorder %s18, 3
      %p76 = por %p74, %p75
      %p78 = scmp.ne.s32.totalorder %s63, %s77
      %p79 = scmp.eq.s32.totalorder %s18, 0
      %p80 = por %p78, %p79
      %s82 = sadd.s32 %s81, 1
      %p85 = scmp.eq.s32.totalorder %s12, 3
      %p86 = scmp.ne.s32.totalorder %s81, %s83
      %p87 = scmp.eq.s32.totalorder %s12, 0
      %p88 = por %p86, %p87
      %p89 = scmp.ne.s32.totalorder %s81, %s83
      %p90 = scmp.eq.s32.totalorder %s17, 3
      %p91 = por %p89, %p90
      %p92 = scmp.ne.s32.totalorder %s83, %s84
      %p93 = scmp.eq.s32.totalorder %s17, 0
      %p94 = por %p92, %p93
      %p95 = scmp.ne.s32.totalorder %s83, %s84
      %p96 = scmp.eq.s32.totalorder %s18, 3
      %p97 = por %p95, %p96
      %p99 = scmp.ne.s32.totalorder %s84, %s98
      %p100 = scmp.eq.s32.totalorder %s18, 0
      %p101 = por %p99, %p100
      %s103 = sadd.s32 %s102, 1
      %p106 = scmp.eq.s32.totalorder %s12, 3
      %p107 = scmp.ne.s32.totalorder %s102, %s104
      %p108 = scmp.eq.s32.totalorder %s12, 0
      %p109 = por %p107, %p108
      %p110 = scmp.ne.s32.totalorder %s102, %s104
      %p111 = scmp.eq.s32.totalorder %s17, 3
      %p112 = por %p110, %p111
      %p113 = scmp.ne.s32.totalorder %s104, %s105
      %p114 = scmp.eq.s32.totalorder %s17, 0
      %p115 = por %p113, %p114
      %p116 = scmp.ne.s32.totalorder %s104, %s105
      %p117 = scmp.eq.s32.totalorder %s18, 3
      %p118 = por %p116, %p117
      %p120 = scmp.ne.s32.totalorder %s105, %s119
      %p121 = scmp.eq.s32.totalorder %s18, 0
      %p122 = por %p120, %p121
      %s124 = sadd.s32 %s123, 1
      %p127 = scmp.eq.s32.totalorder %s12, 3
      %p128 = scmp.ne.s32.totalorder %s123, %s125
      %p129 = scmp.eq.s32.totalorder %s12, 0
      %p130 = por %p128, %p129
      %p131 = scmp.ne.s32.totalorder %s123, %s125
      %p132 = scmp.eq.s32.totalorder %s17, 3
      %p133 = por %p131, %p132
      %p134 = scmp.ne.s32.totalorder %s125, %s126
      %p135 = scmp.eq.s32.totalorder %s17, 0
      %p136 = por %p134, %p135
      %p137 = scmp.ne.s32.totalorder %s125, %s126
      %p138 = scmp.eq.s32.totalorder %s18, 3
      %p139 = por %p137, %p138
      %p141 = scmp.ne.s32.totalorder %s126, %s140
      %p142 = scmp.eq.s32.totalorder %s18, 0
      %p143 = por %p141, %p142
      %s144 = ssub.s32 %s19, %s31
      %p145 = scmp.eq.s32.totalorder %s144, 0
      %s147 = sadd.s32 %s146, 1
      %s148 = scalar_select %p145, %s146, %s147
      %p151 = pneg %p145
      %p152 = scmp.eq.s32.totalorder %s12, 3
      %p153 = por %p151, %p152
      %p154 = scmp.ne.s32.totalorder %s146, %s149
      %p155 = scmp.eq.s32.totalorder %s12, 0
      %p156 = por %p154, %p155
      %p157 = scmp.ne.s32.totalorder %s146, %s149
      %p158 = scmp.eq.s32.totalorder %s17, 3
      %p159 = por %p157, %p158
      %p160 = scmp.ne.s32.totalorder %s149, %s150
      %p161 = scmp.eq.s32.totalorder %s17, 0
      %p162 = por %p160, %p161
      %p163 = scmp.ne.s32.totalorder %s149, %s150
      %p164 = scmp.eq.s32.totalorder %s18, 3
      %p165 = por %p163, %p164
      %p167 = scmp.ne.s32.totalorder %s150, %s166
      %p168 = scmp.eq.s32.totalorder %s18, 0
      %p169 = por %p167, %p168
      %p170 = scmp.le.s32.totalorder 1, %s12
      %p171 = scmp.lt.s32.totalorder %s12, 5
      %p172 = pnand %p170, %p171
      %p173 = pneg %p172
      // Predicated region
      $region9: #{tpu_custom_call.1} parent=5 // pred_check
        _
      $region10: #{tpu_custom_call.1} parent=5 // pred_check_branch
        %175 = sbr.rel (%p172) target = $region12
      $region11: #{tpu_custom_call.1} parent=5 // pred_region
        %s176 = ssub.s32 %s12, 1
        // Predicated region
        $region13: #{tpu_custom_call.1} parent=11 // pred_check
          %p177 = pneg %p73
        $region14: #{tpu_custom_call.1} parent=11 // pred_check_branch
          %179 = sbr.rel (%p177) target = $region16
        $region15: #{tpu_custom_call.1} parent=11 // pred_region
          _
        $region16: #{tpu_custom_call.1} parent=11 // pred_fallthru
          _
        // Predicated region
        $region17: #{tpu_custom_call.1} parent=11 // pred_check
          %p180 = pneg %p94
        $region18: #{tpu_custom_call.1} parent=11 // pred_check_branch
          %182 = sbr.rel (%p180) target = $region20
        $region19: #{tpu_custom_call.1} parent=11 // pred_region
          _
        $region20: #{tpu_custom_call.1} parent=11 // pred_fallthru
          _
        // Predicated region
        $region21: #{tpu_custom_call.1} parent=11 // pred_check
          %p183 = pneg %p115
        $region22: #{tpu_custom_call.1} parent=11 // pred_check_branch
          %185 = sbr.rel (%p183) target = $region24
        $region23: #{tpu_custom_call.1} parent=11 // pred_region
          _
        $region24: #{tpu_custom_call.1} parent=11 // pred_fallthru
          _
        // Predicated region
        $region25: #{tpu_custom_call.1} parent=11 // pred_check
          %p186 = pneg %p136
        $region26: #{tpu_custom_call.1} parent=11 // pred_check_branch
          %188 = sbr.rel (%p186) target = $region28
        $region27: #{tpu_custom_call.1} parent=11 // pred_region
          _
        $region28: #{tpu_custom_call.1} parent=11 // pred_fallthru
          _
      $region12: #{tpu_custom_call.1} parent=5 // pred_fallthru
        _
      %p189 = scmp.lt.s32.totalorder %s12, 4
      // Predicated region
      $region29: #{tpu_custom_call.1} parent=5 // pred_check
        %p190 = pneg %p189
      $region30: #{tpu_custom_call.1} parent=5 // pred_check_branch
        %192 = sbr.rel (%p190) target = $region32
      $region31: #{tpu_custom_call.1} parent=5 // pred_region
        // Predicated region
        $region33: #{tpu_custom_call.1} parent=31 // pred_check
          %p193 = pneg %p46
        $region34: #{tpu_custom_call.1} parent=31 // pred_check_branch
          %195 = sbr.rel (%p193) target = $region36
        $region35: #{tpu_custom_call.1} parent=31 // pred_region
          %s196 = sand.u32 %s36, 1
          %s197 = sand.u32 %s36, 1
          %s198 = smul.addr %s197, 128
          %s199 = scalar_lea.vmem [#allocation3], %s198
          %s200 = smul.u32 2, %s19
          %s201 = smul.u32 8, %s20
          %s202 = smul.addr %s200, 32
          %s203 = sadd.s32 %s201, %s202
          %s204 = smul.addr %s203, 8
          %s205 = scalar_lea.vmem %s0, %s204
          // Predicated region
          $region37: #{tpu_custom_call.1} parent=35 // pred_check
            _
          $region38: #{tpu_custom_call.1} parent=35 // pred_check_branch
            %207 = sbr.rel (0) target = $region40
          $region39: #{tpu_custom_call.1} parent=35 // pred_region
            // Predicated region
            $region41: #{tpu_custom_call.1} parent=39 // pred_check
              _
            $region42: #{tpu_custom_call.1} parent=39 // pred_check_branch
              %209 = sbr.rel (0) target = $region44
            $region43: #{tpu_custom_call.1} parent=39 // pred_region
              // Predicated region
              $region56: #{tpu_custom_call.1} parent=43 // pred_check
                _
              $region57: #{tpu_custom_call.1} parent=43 // pred_check_branch
                %254 = sbr.rel (0) target = $region59
              $region58: #{tpu_custom_call.1} parent=43 // pred_region
                loop: start=0, step=1, limit=1
                $region60: #{tpu_custom_call.1} parent=58 // loop_pre_header
                  _
                $region61: #{tpu_custom_call.1} parent=58 // loop_header
                  %s256 = sphi 0, %s260
                  %p257 = scmp.ge.s32.totalorder %s256, 1
                  %s261 = sphi %s205, %s205
                  %s262 = sphi %s199, %s199
                $region62: #{tpu_custom_call.1} parent=58 // loop_header_branch
                  %259 = sbr.rel (%p257) target = $region66
                $region63: #{tpu_custom_call.1} parent=58 // loop_body
                  %v263 = vld [vmem:[%s261] sm:$0xff]
                  %264 = vst [vmem:[%s262] sm:$0xff] %v263
                  %v265 = vld [vmem:[%s261 + $0x8] sm:$0xff]
                  %266 = vst [vmem:[%s262 + $0x8] sm:$0xff] %v265
                  %v267 = vld [vmem:[%s261 + $0x10] sm:$0xff]
                  %268 = vst [vmem:[%s262 + $0x10] sm:$0xff] %v267
                  %v269 = vld [vmem:[%s261 + $0x18] sm:$0xff]
                  %270 = vst [vmem:[%s262 + $0x18] sm:$0xff] %v269
                  %v271 = vld [vmem:[%s261 + $0x20] sm:$0xff]
                  %272 = vst [vmem:[%s262 + $0x20] sm:$0xff] %v271
                  %v273 = vld [vmem:[%s261 + $0x28] sm:$0xff]
                  %274 = vst [vmem:[%s262 + $0x28] sm:$0xff] %v273
                  %v275 = vld [vmem:[%s261 + $0x30] sm:$0xff]
                  %276 = vst [vmem:[%s262 + $0x30] sm:$0xff] %v275
                  %v277 = vld [vmem:[%s261 + $0x38] sm:$0xff]
                  %278 = vst [vmem:[%s262 + $0x38] sm:$0xff] %v277
                  %v279 = vld [vmem:[%s261 + $0x100] sm:$0xff]
                  %280 = vst [vmem:[%s262 + $0x40] sm:$0xff] %v279
                  %v281 = vld [vmem:[%s261 + $0x108] sm:$0xff]
                  %282 = vst [vmem:[%s262 + $0x48] sm:$0xff] %v281
                  %v283 = vld [vmem:[%s261 + $0x110] sm:$0xff]
                  %284 = vst [vmem:[%s262 + $0x50] sm:$0xff] %v283
                  %v285 = vld [vmem:[%s261 + $0x118] sm:$0xff]
                  %286 = vst [vmem:[%s262 + $0x58] sm:$0xff] %v285
                  %v287 = vld [vmem:[%s261 + $0x120] sm:$0xff]
                  %288 = vst [vmem:[%s262 + $0x60] sm:$0xff] %v287
                  %v289 = vld [vmem:[%s261 + $0x128] sm:$0xff]
                  %290 = vst [vmem:[%s262 + $0x68] sm:$0xff] %v289
                  %v291 = vld [vmem:[%s261 + $0x130] sm:$0xff]
                  %292 = vst [vmem:[%s262 + $0x70] sm:$0xff] %v291
                  %v293 = vld [vmem:[%s261 + $0x138] sm:$0xff]
                  %294 = vst [vmem:[%s262 + $0x78] sm:$0xff] %v293
                $region64: #{tpu_custom_call.1} parent=58 // loop_footer
                  %s260 = sadd.s32 1, %s256
                $region65: #{tpu_custom_call.1} parent=58 // loop_footer_branch
                  %255 = sbr.rel target = $region61
                $region66: #{tpu_custom_call.1} parent=58 // loop_exit
                  _
              $region59: #{tpu_custom_call.1} parent=43 // pred_fallthru
                _
              // Predicated region
              $region67: #{tpu_custom_call.1} parent=43 // pred_check
                _
              $region68: #{tpu_custom_call.1} parent=43 // pred_check_branch
                %296 = sbr.rel target = $region70
              $region69: #{tpu_custom_call.1} parent=43 // pred_region
                _
              $region70: #{tpu_custom_call.1} parent=43 // pred_fallthru
                _
            $region44: #{tpu_custom_call.1} parent=39 // pred_fallthru
              _
            // Predicated region
            $region45: #{tpu_custom_call.1} parent=39 // pred_check
              _
            $region46: #{tpu_custom_call.1} parent=39 // pred_check_branch
              %211 = sbr.rel target = $region48
            $region47: #{tpu_custom_call.1} parent=39 // pred_region
              loop: start=0, step=1, limit=1
              $region49: #{tpu_custom_call.1} parent=47 // loop_pre_header
                _
              $region50: #{tpu_custom_call.1} parent=47 // loop_header
                %s214 = sphi 0, %s218
                %p215 = scmp.ge.s32.totalorder %s214, 1
                %s219 = sphi %s205, %s205
                %s220 = sphi %s199, %s199
              $region51: #{tpu_custom_call.1} parent=47 // loop_header_branch
                %217 = sbr.rel (%p215) target = $region55
              $region52: #{tpu_custom_call.1} parent=47 // loop_body
                %v221 = vld [vmem:[%s219] sm:$0xff]
                %222 = vst [vmem:[%s220] sm:$0xff] %v221
                %v223 = vld [vmem:[%s219 + $0x8] sm:$0xff]
                %224 = vst [vmem:[%s220 + $0x8] sm:$0xff] %v223
                %v225 = vld [vmem:[%s219 + $0x10] sm:$0xff]
                %226 = vst [vmem:[%s220 + $0x10] sm:$0xff] %v225
                %v227 = vld [vmem:[%s219 + $0x18] sm:$0xff]
                %228 = vst [vmem:[%s220 + $0x18] sm:$0xff] %v227
                %v229 = vld [vmem:[%s219 + $0x20] sm:$0xff]
                %230 = vst [vmem:[%s220 + $0x20] sm:$0xff] %v229
                %v231 = vld [vmem:[%s219 + $0x28] sm:$0xff]
                %232 = vst [vmem:[%s220 + $0x28] sm:$0xff] %v231
                %v233 = vld [vmem:[%s219 + $0x30] sm:$0xff]
                %234 = vst [vmem:[%s220 + $0x30] sm:$0xff] %v233
                %v235 = vld [vmem:[%s219 + $0x38] sm:$0xff]
                %236 = vst [vmem:[%s220 + $0x38] sm:$0xff] %v235
                %v237 = vld [vmem:[%s219 + $0x100] sm:$0xff]
                %238 = vst [vmem:[%s220 + $0x40] sm:$0xff] %v237
                %v239 = vld [vmem:[%s219 + $0x108] sm:$0xff]
                %240 = vst [vmem:[%s220 + $0x48] sm:$0xff] %v239
                %v241 = vld [vmem:[%s219 + $0x110] sm:$0xff]
                %242 = vst [vmem:[%s220 + $0x50] sm:$0xff] %v241
                %v243 = vld [vmem:[%s219 + $0x118] sm:$0xff]
                %244 = vst [vmem:[%s220 + $0x58] sm:$0xff] %v243
                %v245 = vld [vmem:[%s219 + $0x120] sm:$0xff]
                %246 = vst [vmem:[%s220 + $0x60] sm:$0xff] %v245
                %v247 = vld [vmem:[%s219 + $0x128] sm:$0xff]
                %248 = vst [vmem:[%s220 + $0x68] sm:$0xff] %v247
                %v249 = vld [vmem:[%s219 + $0x130] sm:$0xff]
                %250 = vst [vmem:[%s220 + $0x70] sm:$0xff] %v249
                %v251 = vld [vmem:[%s219 + $0x138] sm:$0xff]
                %252 = vst [vmem:[%s220 + $0x78] sm:$0xff] %v251
              $region53: #{tpu_custom_call.1} parent=47 // loop_footer
                %s218 = sadd.s32 1, %s214
              $region54: #{tpu_custom_call.1} parent=47 // loop_footer_branch
                %213 = sbr.rel target = $region50
              $region55: #{tpu_custom_call.1} parent=47 // loop_exit
                _
            $region48: #{tpu_custom_call.1} parent=39 // pred_fallthru
              _
          $region40: #{tpu_custom_call.1} parent=35 // pred_fallthru
            _
          %297 = vnop
        $region36: #{tpu_custom_call.1} parent=31 // pred_fallthru
          _
      $region32: #{tpu_custom_call.1} parent=5 // pred_fallthru
        _
      %p298 = scmp.le.s32.totalorder 1, %s12
      %p299 = scmp.lt.s32.totalorder %s12, 5
      %p300 = pnand %p298, %p299
      %p301 = pneg %p300
      // Predicated region
      $region71: #{tpu_custom_call.1} parent=5 // pred_check
        _
      $region72: #{tpu_custom_call.1} parent=5 // pred_check_branch
        %303 = sbr.rel (%p300) target = $region74
      $region73: #{tpu_custom_call.1} parent=5 // pred_region
        %s304 = ssub.s32 %s12, 1
        %s305 = sand.u32 %s39, 1
        %s306 = sand.u32 %s39, 1
        %s307 = smul.addr %s306, 128
        %s308 = scalar_lea.vmem [#allocation3], %s307
        // Predicated region
        $region75: #{tpu_custom_call.1} parent=73 // pred_check
          %p309 = pneg %p52
        $region76: #{tpu_custom_call.1} parent=73 // pred_check_branch
          %311 = sbr.rel (%p309) target = $region78
        $region77: #{tpu_custom_call.1} parent=73 // pred_region
          _
        $region78: #{tpu_custom_call.1} parent=73 // pred_fallthru
          _
        %s312 = sand.u32 %s39, 1
        %s313 = sand.u32 %s39, 1
        %s314 = smul.addr %s313, 128
        %s315 = scalar_lea.vmem [#allocation3], %s314
        %p316 = pneg %p52
        %p317 = pneg %p49
        %p318 = pneg %p73
        %p319 = pneg %p70
        %p320 = pneg %p94
        %p321 = pneg %p91
        %p322 = pneg %p115
        %p323 = pneg %p112
        %p324 = pneg %p136
        %p325 = pneg %p133
        %p326 = pneg %p162
        %p327 = pneg %p159
        %s328 = smul.u32 2, %s21
        %s329 = smul.u32 8, %s22
        %p330 = scmp.eq.s32.totalorder %s22, 0
        // Predicated region
        $region79: #{tpu_custom_call.1} parent=73 // pred_check
          %p331 = pneg %p330
        $region80: #{tpu_custom_call.1} parent=73 // pred_check_branch
          %333 = sbr.rel (%p331) target = $region82
        $region81: #{tpu_custom_call.1} parent=73 // pred_region
          %vm334 = vcmask 25600
          %335 = vst.msk [vmem:[#allocation2] sm:$0x3] %vm334, 0.0
        $region82: #{tpu_custom_call.1} parent=73 // pred_fallthru
          _
        %v336 = vld [vmem:[%s308] sm:$0xff]
        %v337 = vld [vmem:[%s308 + $0x8] sm:$0xff]
        %v338 = vld [vmem:[%s308 + $0x10] sm:$0xff]
        %v339 = vld [vmem:[%s308 + $0x18] sm:$0xff]
        %v340 = vld [vmem:[%s308 + $0x20] sm:$0xff]
        %v341 = vld [vmem:[%s308 + $0x28] sm:$0xff]
        %v342 = vld [vmem:[%s308 + $0x30] sm:$0xff]
        %v343 = vld [vmem:[%s308 + $0x38] sm:$0xff]
        %v344 = vld [vmem:[%s308 + $0x40] sm:$0xff]
        %v345 = vld [vmem:[%s308 + $0x48] sm:$0xff]
        %v346 = vld [vmem:[%s308 + $0x50] sm:$0xff]
        %v347 = vld [vmem:[%s308 + $0x58] sm:$0xff]
        %v348 = vld [vmem:[%s308 + $0x60] sm:$0xff]
        %v349 = vld [vmem:[%s308 + $0x68] sm:$0xff]
        %v350 = vld [vmem:[%s308 + $0x70] sm:$0xff]
        %v351 = vld [vmem:[%s308 + $0x78] sm:$0xff]
        %v352 = vld [vmem:[#allocation2] sm:$0x3]
        %vm353 = vcmask 31744
        %v354 = vsel %vm353, %v336, 0.0
        %v355 = vsel %vm353, %v337, 0.0
        %v356 = vadd.f32 %v354, %v355
        %v357 = vsel %vm353, %v338, 0.0
        %v358 = vadd.f32 %v356, %v357
        %v359 = vsel %vm353, %v339, 0.0
        %v360 = vadd.f32 %v358, %v359
        %v361 = vsel %vm353, %v340, 0.0
        %v362 = vadd.f32 %v360, %v361
        %v363 = vsel %vm353, %v341, 0.0
        %v364 = vadd.f32 %v362, %v363
        %v365 = vsel %vm353, %v342, 0.0
        %v366 = vadd.f32 %v364, %v365
        %v367 = vsel %vm353, %v343, 0.0
        %v368 = vadd.f32 %v366, %v367
        %v369 = vrot.slane %v368, 4
        %v370 = vadd.f32 %v368, %v369
        %v371 = vrot.slane %v370, 2
        %v372 = vadd.f32 %v370, %v371
        %v373 = vrot.slane %v372, 1
        %v374 = vadd.f32 %v372, %v373
        %v375 = vsel %vm353, %v344, 0.0
        %v376 = vsel %vm353, %v345, 0.0
        %v377 = vadd.f32 %v375, %v376
        %v378 = vsel %vm353, %v346, 0.0
        %v379 = vadd.f32 %v377, %v378
        %v380 = vsel %vm353, %v347, 0.0
        %v381 = vadd.f32 %v379, %v380
        %v382 = vsel %vm353, %v348, 0.0
        %v383 = vadd.f32 %v381, %v382
        %v384 = vsel %vm353, %v349, 0.0
        %v385 = vadd.f32 %v383, %v384
        %v386 = vsel %vm353, %v350, 0.0
        %v387 = vadd.f32 %v385, %v386
        %v388 = vsel %vm353, %v351, 0.0
        %v389 = vadd.f32 %v387, %v388
        %v390 = vrot.slane %v389, 4
        %v391 = vadd.f32 %v389, %v390
        %v392 = vrot.slane %v391, 2
        %v393 = vadd.f32 %v391, %v392
        %v394 = vrot.slane %v393, 1
        %v395 = vadd.f32 %v393, %v394
        %vm398 = vcmask 1041409
        %v399 = vsel %vm398, %v395, %v374
        %v401 = vadd.f32 %v352, %v399
        %vm402 = vcmask 25600
        %403 = vst.msk [vmem:[#allocation2] sm:$0x3] %vm402, %v401
        %p404 = scmp.eq.s32.totalorder %s22, 3
        // Predicated region
        $region83: #{tpu_custom_call.1} parent=73 // pred_check
          %p405 = pneg %p404
        $region84: #{tpu_custom_call.1} parent=73 // pred_check_branch
          %407 = sbr.rel (%p405) target = $region86
        $region85: #{tpu_custom_call.1} parent=73 // pred_region
          %v408 = vld [vmem:[#allocation2] sm:$0x3]
          %v409 = vmul.f32 %v408, 0.00390625
          %v410 = vld [vmem:[%s1] sm:$0xf]
          %v411 = vld [vmem:[%s2] sm:$0x1]
          %v413 = vlaneseq
          %v414 = vshrl.u32 %v413, 7
          %v415 = vsub.s32 0, %v414
          %v416 = vrot.slane %v411, %v415
          %v419 = vsel %vm353, %v409, 0
          %vm421 = vcmask 1043456
          %v423 = vsel %vm421, %v410, 0
          %425 = vmatprep.subr.mxu0 0.0
          %426 = vmatpush1.msra.mxu0 %v423
          %427 = vmatprep.subr.mxu0 0.0
          %428 = vmatpush1.msra.mxu0 0.0
          %429 = vmatprep.subr.mxu0 0.0
          %430 = vmatpush1.msra.mxu0 0.0
          %431 = vmatprep.subr.mxu0 0.0
          %432 = vmatpush1.msra.mxu0 0.0
          %433 = vmatprep.subr.mxu0 0.0
          %434 = vmatpush1.msra.mxu0 0.0
          %435 = vmatprep.subr.mxu0 0.0
          %436 = vmatpush1.msra.mxu0 0.0
          %437 = vmatprep.subr.mxu0 0.0
          %438 = vmatpush1.msra.mxu0 0.0
          %439 = vmatprep.subr.mxu0 0.0
          %440 = vmatpush1.msra.mxu0 0.0
          %441 = vmatprep.subr.mxu0 0.0
          %442 = vmatpush1.msra.mxu0 0.0
          %443 = vmatprep.subr.mxu0 0.0
          %444 = vmatpush1.msra.mxu0 0.0
          %445 = vmatprep.subr.mxu0 0.0
          %446 = vmatpush1.msra.mxu0 0.0
          %447 = vmatprep.subr.mxu0 0.0
          %448 = vmatpush1.msra.mxu0 0.0
          %449 = vmatprep.subr.mxu0 0.0
          %450 = vmatpush1.msra.mxu0 0.0
          %451 = vmatprep.subr.mxu0 0.0
          %452 = vmatpush1.msra.mxu0 0.0
          %453 = vmatprep.subr.mxu0 0.0
          %454 = vmatpush1.msra.mxu0 0.0
          %455 = vmatprep.subr.mxu0 0.0
          %456 = vmatpush1.msra.mxu0 0.0
          %457 = vmatprep.subr.mxu0 0.0
          %458 = vmatpush1.msra.mxu0 0.0
          %459 = vmatprep.subr.mxu0 0.0
          %460 = vmatpush1.msra.mxu0 0.0
          %461 = vmatprep.subr.mxu0 0.0
          %462 = vmatpush1.msra.mxu0 0.0
          %463 = vmatprep.subr.mxu0 0.0
          %464 = vmatpush1.msra.mxu0 0.0
          %465 = vmatprep.subr.mxu0 0.0
          %466 = vmatpush1.msra.mxu0 0.0
          %467 = vmatprep.subr.mxu0 0.0
          %468 = vmatpush1.msra.mxu0 0.0
          %469 = vmatprep.subr.mxu0 0.0
          %470 = vmatpush1.msra.mxu0 0.0
          %471 = vmatprep.subr.mxu0 0.0
          %472 = vmatpush1.msra.mxu0 0.0
          %473 = vmatprep.subr.mxu0 0.0
          %474 = vmatpush1.msra.mxu0 0.0
          %475 = vmatprep.subr.mxu0 0.0
          %476 = vmatpush1.msra.mxu0 0.0
          %477 = vmatprep.subr.mxu0 0.0
          %478 = vmatpush1.msra.mxu0 0.0
          %479 = vmatprep.subr.mxu0 0.0
          %480 = vmatpush1.msra.mxu0 0.0
          %481 = vmatprep.subr.mxu0 0.0
          %482 = vmatpush1.msra.mxu0 0.0
          %483 = vmatprep.subr.mxu0 0.0
          %484 = vmatpush1.msra.mxu0 0.0
          %485 = vmatprep.subr.mxu0 0.0
          %486 = vmatpush1.msra.mxu0 0.0
          %487 = vmatprep.subr.mxu0 0.0
          %488 = vmatpush1.msra.mxu0 0.0
          %489 = vmatprep.mubr.f32.mxu0 0.0
          %490 = vmatmul.mubr.f32.gmra.mrb[0].mxu0 %v419
          %v491 = vpop.f32.mrb[0].mxu0
          %v492 = vadd.f32 %v416, %v491
          %v493 = vpop.f32.mrb[0].mxu0
          %494 = vdwg.mxu0
          %v495 = vmax.f32 %v492, 0.0
          %v496 = vld [vmem:[%s3] sm:$0xff]
          %v497 = vld [vmem:[%s3 + $0x8] sm:$0x1]
          %v498 = vld [vmem:[%s4] sm:$0x1]
          %v500 = vlaneseq
          %v501 = vshrl.u32 %v500, 7
          %v502 = vsub.s32 0, %v501
          %v503 = vrot.slane %v498, %v502
          %vm505 = vcmask 72704
          %v507 = vsel %vm505, %v495, 0
          %vm509 = vcmask 1040384
          %v511 = vsel %vm509, %v497, 0
          %513 = vmatprep.subr.mxu0 0.0
          %514 = vmatpush1.msra.mxu0 %v496
          %515 = vmatprep.subr.mxu0 0.0
          %516 = vmatpush1.msra.mxu0 %v511
          %517 = vmatprep.subr.mxu0 0.0
          %518 = vmatpush1.msra.mxu0 0.0
          %519 = vmatprep.subr.mxu0 0.0
          %520 = vmatpush1.msra.mxu0 0.0
          %521 = vmatprep.subr.mxu0 0.0
          %522 = vmatpush1.msra.mxu0 0.0
          %523 = vmatprep.subr.mxu0 0.0
          %524 = vmatpush1.msra.mxu0 0.0
          %525 = vmatprep.subr.mxu0 0.0
          %526 = vmatpush1.msra.mxu0 0.0
          %527 = vmatprep.subr.mxu0 0.0
          %528 = vmatpush1.msra.mxu0 0.0
          %529 = vmatprep.subr.mxu0 0.0
          %530 = vmatpush1.msra.mxu0 0.0
          %531 = vmatprep.subr.mxu0 0.0
          %532 = vmatpush1.msra.mxu0 0.0
          %533 = vmatprep.subr.mxu0 0.0
          %534 = vmatpush1.msra.mxu0 0.0
          %535 = vmatprep.subr.mxu0 0.0
          %536 = vmatpush1.msra.mxu0 0.0
          %537 = vmatprep.subr.mxu0 0.0
          %538 = vmatpush1.msra.mxu0 0.0
          %539 = vmatprep.subr.mxu0 0.0
          %540 = vmatpush1.msra.mxu0 0.0
          %541 = vmatprep.subr.mxu0 0.0
          %542 = vmatpush1.msra.mxu0 0.0
          %543 = vmatprep.subr.mxu0 0.0
          %544 = vmatpush1.msra.mxu0 0.0
          %545 = vmatprep.subr.mxu0 0.0
          %546 = vmatpush1.msra.mxu0 0.0
          %547 = vmatprep.subr.mxu0 0.0
          %548 = vmatpush1.msra.mxu0 0.0
          %549 = vmatprep.subr.mxu0 0.0
          %550 = vmatpush1.msra.mxu0 0.0
          %551 = vmatprep.subr.mxu0 0.0
          %552 = vmatpush1.msra.mxu0 0.0
          %553 = vmatprep.subr.mxu0 0.0
          %554 = vmatpush1.msra.mxu0 0.0
          %555 = vmatprep.subr.mxu0 0.0
          %556 = vmatpush1.msra.mxu0 0.0
          %557 = vmatprep.subr.mxu0 0.0
          %558 = vmatpush1.msra.mxu0 0.0
          %559 = vmatprep.subr.mxu0 0.0
          %560 = vmatpush1.msra.mxu0 0.0
          %561 = vmatprep.subr.mxu0 0.0
          %562 = vmatpush1.msra.mxu0 0.0
          %563 = vmatprep.subr.mxu0 0.0
          %564 = vmatpush1.msra.mxu0 0.0
          %565 = vmatprep.subr.mxu0 0.0
          %566 = vmatpush1.msra.mxu0 0.0
          %567 = vmatprep.subr.mxu0 0.0
          %568 = vmatpush1.msra.mxu0 0.0
          %569 = vmatprep.subr.mxu0 0.0
          %570 = vmatpush1.msra.mxu0 0.0
          %571 = vmatprep.subr.mxu0 0.0
          %572 = vmatpush1.msra.mxu0 0.0
          %573 = vmatprep.subr.mxu0 0.0
          %574 = vmatpush1.msra.mxu0 0.0
          %575 = vmatprep.subr.mxu0 0.0
          %576 = vmatpush1.msra.mxu0 0.0
          %577 = vmatprep.mubr.f32.mxu0 0.0
          %578 = vmatmul.mubr.f32.gmra.mrb[0].mxu0 %v507
          %v579 = vpop.f32.mrb[0].mxu0
          %v580 = vadd.f32 %v503, %v579
          %v581 = vpop.f32.mrb[0].mxu0
          %582 = vdwg.mxu0
          %vm583 = vcmask 17408
          %584 = vst.msk [vmem:[#allocation4] sm:$0x3] %vm583, %v580
        $region86: #{tpu_custom_call.1} parent=73 // pred_fallthru
          _
        // Predicated region
        $region87: #{tpu_custom_call.1} parent=73 // pred_check
          %p585 = pneg %p159
        $region88: #{tpu_custom_call.1} parent=73 // pred_check_branch
          %587 = sbr.rel (%p585) target = $region90
        $region89: #{tpu_custom_call.1} parent=73 // pred_region
          %s589 = ssub.s32 32, 32
          %590 = vsyncadd [#allocation5], %s589
          %s591 = smul.addr %s21, 32
          %s592 = scalar_lea.hbm %s5, %s591
          %s594 = sshll.u32 [#allocation4], 4
          %s595 = int_to_ptr.vmem [resolvable:$true] %s594
          %597 = dma.vmem_to_hbm [thread:$0]  %s595, 32, %s592, [#allocation5]
        $region90: #{tpu_custom_call.1} parent=73 // pred_fallthru
          _
        // Predicated region
        $region91: #{tpu_custom_call.1} parent=73 // pred_check
          %p598 = pneg %p159
        $region92: #{tpu_custom_call.1} parent=73 // pred_check_branch
          %600 = sbr.rel (%p598) target = $region94
        $region93: #{tpu_custom_call.1} parent=73 // pred_region
          %601 = dma.done [#allocation5], 32
        $region94: #{tpu_custom_call.1} parent=73 // pred_fallthru
          _
      $region74: #{tpu_custom_call.1} parent=5 // pred_fallthru
        _
      %p602 = scmp.le.s32.totalorder 2, %s12
      // Predicated region
      $region95: #{tpu_custom_call.1} parent=5 // pred_check
        %p603 = pneg %p602
      $region96: #{tpu_custom_call.1} parent=5 // pred_check_branch
        %605 = sbr.rel (%p603) target = $region98
      $region97: #{tpu_custom_call.1} parent=5 // pred_region
        %s606 = ssub.s32 %s12, 2
      $region98: #{tpu_custom_call.1} parent=5 // pred_fallthru
        _
    $region6: #{tpu_custom_call.1} parent=1 // loop_footer
      %s16 = sadd.s32 1, %s12
    $region7: #{tpu_custom_call.1} parent=1 // loop_footer_branch
      %11 = sbr.rel target = $region3
    $region8: #{tpu_custom_call.1} parent=1 // loop_exit
      _
    %607 = vsyncpa [#allocation5], 1
    %s608 = scalar_lea.sflag [#allocation5], 1
    %609 = vsyncpa %s608, 1

</llo_original>
